<compile_context>
chip_gen: v6e
topology: v6e:2x2x1
jax: 0.10.0
libtpu: 0.0.40
codegen_flags: <defaults>
</compile_context>

<pallas_src>
import jax
import jax.numpy as jnp
from jax.experimental import pallas as pl
from jax.experimental.pallas import tpu as pltpu

LANE = 128


def _round_up(n, m):
    return ((n + m - 1) // m) * m


def _pad2d(a, rows, cols):
    r, c = a.shape
    if r == rows and c == cols:
        return a
    return jnp.pad(a, ((0, rows - r), (0, cols - c)))


def _silu(z):
    # sigmoid -> exp/reciprocal land on the EUP slot; keeps VALU slots free.
    return z * jax.nn.sigmoid(z)


# ----------------------------- Pallas kernel --------------------------------
def _diffusion_kernel(
    p_ref,                      # packed activations [x | cond | t | 0] (TB, Pp)
    wxb_ref,                    # (Pp, Hp)  x-rows of net W1, row-shifted
    wemb_ref, bemb_ref,         # (Pp, 2Hp), (1, 2Hp)  [cond-embed | time-embed] layer 1
    wfold_ref, b1f_ref,         # (2Hp, Hp), (1, Hp)   [cw2@Wc ; tw2@Wt], folded bias
    w2_ref, b2_ref,
    w3_ref, b3_ref,
    w4_ref, b4_ref,
    out_ref,
):
    f32 = jnp.float32
    wdt = w2_ref.dtype                       # weight compute dtype (bf16 or f32)

    p = p_ref[...]                           # (TB, Pp) f32
    pw = p.astype(wdt)

    # Embedding first layers (condition Linear + rank-1 time Linear) fused
    # into one matmul over the packed input; zero weight rows/cols make the
    # padding exact (SiLU(0) = 0).
    emb = _silu(jnp.dot(pw, wemb_ref[...], preferred_element_type=f32)
                + bemb_ref[...])             # (TB, 2Hp) = [silu(ch) | silu(th)]

    # net layer 1 as accumulating dots (no concatenate); tw2/cw2/tb2/cb2 are
    # pre-folded into wfold / b1f host-side.
    h = jnp.dot(pw, wxb_ref[...], preferred_element_type=f32)
    h = h + jnp.dot(emb.astype(wdt), wfold_ref[...], preferred_element_type=f32)
    h = _silu(h + b1f_ref[...])

    # net layers 2..3
    h = _silu(jnp.dot(h.astype(wdt), w2_ref[...],
                      preferred_element_type=f32) + b2_ref[...])
    h = _silu(jnp.dot(h.astype(wdt), w3_ref[...],
                      preferred_element_type=f32) + b3_ref[...])

    # output layer
    out = jnp.dot(h.astype(wdt), w4_ref[...],
                  preferred_element_type=f32) + b4_ref[...]
    out_ref[...] = out.astype(out_ref.dtype)


# ------------------------------ wrapper --------------------------------------
def _tpu_vmem_capacity_bytes():
    try:
        return int(pltpu.get_tpu_info().vmem_capacity_bytes)
    except Exception:
        return 64 * 1024 * 1024          # conservative (v7x per-TensorCore)


def _pick_batch_tile(batch, *, multi_core):
    if multi_core:
        # v7x: 2 TensorCores -> prefer >=2 grid steps, large 128-aligned tiles
        # (256-row floor preference so the 2x256 MXU stays occupied).
        for cand in (2048, 1024, 512, 256, 128, 64, 32, 16, 8):
            if batch % cand == 0 and batch // cand >= 2:
                return cand
        return batch
    # v5e/v6e: single TensorCore -> fewest, largest grid steps.
    for cand in (4096, 2048, 1024, 512, 256, 128, 64, 32, 16, 8):
        if batch % cand == 0:
            return cand
    return batch


def diffusion_forward(x, t, condition, params, *, batch_tile=None,
                      weights_dtype=None, slice_output=True):
    """x: (B, D), t: (B,), condition: (B, C) -> (B, D) (or (B, Dp) padded)."""
    B, D = x.shape
    C = condition.shape[-1]
    H = params["tw2"].shape[0]

    f32 = jnp.float32
    # bf16-resident weights by default: MXU-native on v5e/v6e/v7x, halves
    # resident weight VMEM + the one-time weight DMA. Activations and matmul
    # accumulation stay f32.
    wd = jnp.bfloat16 if weights_dtype is None else weights_dtype

    Pp = _round_up(D + C + 1, LANE)      # packed [x | cond | t] lane width
    Hp = _round_up(H, LANE)
    Dp = _round_up(D, LANE)
    t_col = D + C

    vmem_cap = _tpu_vmem_capacity_bytes()
    multi_core = vmem_cap <= 80 * 1024 * 1024      # v7x signature: 64 MiB/TC
    if batch_tile is None:
        batch_tile = _pick_batch_tile(B, multi_core=multi_core)
    assert B % batch_tile == 0
    grid = (B // batch_tile,)

    # ---- host-side weight prep ----------------------------------------------
    w1 = params["w1"].astype(f32)                    # (D + 2H, H), (in, out)
    wx, wt, wc = w1[:D], w1[D:D + H], w1[D + H:]

    # x-rows of W1, shifted to the packed-input column positions of x.
    wxb = jnp.zeros((Pp, Hp), f32).at[:D, :H].set(wx)

    # Embedding first layers stacked: cols [0,Hp) condition path, [Hp,2Hp) time.
    wemb = jnp.zeros((Pp, 2 * Hp), f32)
    wemb = wemb.at[D:D + C, :H].set(params["cw1"].astype(f32))
    wemb = wemb.at[t_col, Hp:Hp + H].set(params["tw1"].astype(f32).reshape(-1))
    bemb = jnp.zeros((1, 2 * Hp), f32)
    bemb = bemb.at[0, :H].set(params["cb1"].astype(f32))
    bemb = bemb.at[0, Hp:Hp + H].set(params["tb1"].astype(f32))

    # Fold the second embedding linears into net layer 1.
    wcf = params["cw2"].astype(f32) @ wc             # (H, H)
    wtf = params["tw2"].astype(f32) @ wt             # (H, H)
    wfold = jnp.zeros((2 * Hp, Hp), f32)
    wfold = wfold.at[:H, :H].set(wcf)
    wfold = wfold.at[Hp:Hp + H, :H].set(wtf)
    b1f = (params["b1"].astype(f32)
           + params["tb2"].astype(f32) @ wt
           + params["cb2"].astype(f32) @ wc)         # (H,)

    def mat(a, rows, cols):                          # weights (bf16/f32)
        return _pad2d(a.astype(f32), rows, cols).astype(wd)

    def vec(b, cols):                                # biases stay f32
        return _pad2d(b.reshape(1, -1).astype(f32), 1, cols)

    weight_args = [
        wxb.astype(wd),
        wemb.astype(wd), bemb,
        wfold.astype(wd), vec(b1f, Hp),
        mat(params["w2"], Hp, Hp), vec(params["b2"], Hp),
        mat(params["w3"], Hp, Hp), vec(params["b3"], Hp),
        mat(params["w4"], Hp, Dp), vec(params["b4"], Dp),
    ]

    # ---- packed lane-dense activation stream --------------------------------
    p_in = jnp.zeros((B, Pp), f32)
    p_in = p_in.at[:, :D].set(x.astype(f32))
    p_in = p_in.at[:, D:D + C].set(condition.astype(f32))
    p_in = p_in.at[:, t_col].set(t.astype(f32))

    act_spec = pl.BlockSpec((batch_tile, Pp), lambda i: (i, 0))
    out_spec = pl.BlockSpec((batch_tile, Dp), lambda i: (i, 0))

    # Grid-invariant index_map -> each weight is DMA'd to VMEM once and stays
    # resident across all batch tiles.
    def full_spec(shape):
        return pl.BlockSpec(shape, lambda i: (0, 0))

    weight_specs = [full_spec(w.shape) for w in weight_args]

    # Scoped-VMEM budget: resident weights (+pipeline buffer) + streamed
    # activation tiles + temporaries, capped at ~85% of physical VMEM
    # (~108 MiB on v5e/v6e, ~54 MiB on v7x).
    weight_bytes = sum(int(w.size) * w.dtype.itemsize for w in weight_args)
    act_bytes = 4 * batch_tile * (Pp + Dp)
    scratch_bytes = 4 * batch_tile * 4 * Hp
    vmem_limit = 2 * (weight_bytes + act_bytes) + scratch_bytes
    vmem_limit = max(vmem_limit, 32 * 1024 * 1024)
    vmem_limit = min(vmem_limit, int(vmem_cap * 0.85))

    # Advisory cost estimate so XLA overlaps the surrounding pack/pad/slice ops.
    macs_per_row = 3 * Pp * Hp + 4 * Hp * Hp + Hp * Dp
    cost = pl.CostEstimate(
        flops=2 * B * macs_per_row,
        transcendentals=5 * B * Hp,
        bytes_accessed=4 * B * (Pp + Dp) + weight_bytes,
    )

    out_padded = pl.pallas_call(
        _diffusion_kernel,
        out_shape=jax.ShapeDtypeStruct((B, Dp), x.dtype),
        grid_spec=pltpu.PrefetchScalarGridSpec(
            num_scalar_prefetch=0,
            grid=grid,
            in_specs=[act_spec] + weight_specs,
            out_specs=out_spec,
        ),
        compiler_params=pltpu.CompilerParams(
            dimension_semantics=("parallel",),
            vmem_limit_bytes=int(vmem_limit),
        ),
        cost_estimate=cost,
    )(p_in, *weight_args)

    if slice_output:
        return out_padded[:, :D]
    return out_padded          # lane-dense (B, Dp); cols D..Dp-1 are exact zeros


# ------------------------- deterministic params -------------------------------
def init_params(key, input_dim, condition_dim, hidden_dim):
    H = hidden_dim
    ks = jax.random.split(key, 18)
    scale = 0.05

    def w(k, shape):
        return scale * jax.random.normal(k, shape, dtype=jnp.float32)

    def b(k, n):
        return scale * jax.random.normal(k, (n,), dtype=jnp.float32)

    return {
        # time_embed: Linear(1,H) -> SiLU -> Linear(H,H)
        "tw1": w(ks[0], (1, H)), "tb1": b(ks[1], H),
        "tw2": w(ks[2], (H, H)), "tb2": b(ks[3], H),
        # condition_embed: Linear(C,H) -> SiLU -> Linear(H,H)
        "cw1": w(ks[4], (condition_dim, H)), "cb1": b(ks[5], H),
        "cw2": w(ks[6], (H, H)), "cb2": b(ks[7], H),
        # net: Linear(D+2H,H) -> SiLU -> Linear(H,H) -> SiLU -> Linear(H,H)
        #      -> SiLU -> Linear(H,D)   (weights stored (in, out))
        "w1": w(ks[8], (input_dim + 2 * H, H)), "b1": b(ks[9], H),
        "w2": w(ks[10], (H, H)), "b2": b(ks[11], H),
        "w3": w(ks[12], (H, H)), "b3": b(ks[13], H),
        "w4": w(ks[14], (H, input_dim)), "b4": b(ks[15], input_dim),
    }


# --------------------------- pure-JAX reference -------------------------------
def reference_forward(x, t, condition, p):
    silu = lambda z: z * jax.nn.sigmoid(z)
    t_emb = silu(t.reshape(-1, 1) @ p["tw1"] + p["tb1"]) @ p["tw2"] + p["tb2"]
    c_emb = silu(condition @ p["cw1"] + p["cb1"]) @ p["cw2"] + p["cb2"]
    h = jnp.concatenate([x, t_emb, c_emb], axis=-1)
    h = silu(h @ p["w1"] + p["b1"])
    h = silu(h @ p["w2"] + p["b2"])
    h = silu(h @ p["w3"] + p["b3"])
    return h @ p["w4"] + p["b4"]


if __name__ == "__main__":
    B, D_in, C_dim, H = 8, 16, 8, 32

    key = jax.random.PRNGKey(0)
    kx, kt, kc, kp = jax.random.split(key, 4)

    x = jax.random.normal(kx, (B, D_in), dtype=jnp.float32)
    t = jax.random.uniform(kt, (B,), dtype=jnp.float32)
    cond = jax.random.normal(kc, (B, C_dim), dtype=jnp.float32)

    params = init_params(kp, D_in, C_dim, H)
    ref = reference_forward(x, t, cond, params)

    # exact path: f32-resident weights (folding changes only f32 rounding)
    out_f32 = jax.block_until_ready(
        diffusion_forward(x, t, cond, params, weights_dtype=jnp.float32))
    assert out_f32.shape == (B, D_in)
    assert jnp.allclose(out_f32, ref, atol=1e-4, rtol=1e-4), "f32 mismatch vs reference"

    # default path: bf16-resident weights (MXU-native), f32 activations/accum
    out_def = jax.block_until_ready(diffusion_forward(x, t, cond, params))
    assert out_def.shape == (B, D_in)
    assert bool(jnp.all(jnp.isfinite(out_def)))
    assert jnp.allclose(out_def, ref, atol=1e-1, rtol=1e-1), "bf16 mismatch vs reference"

    print("KERNEL_OK")
</pallas_src>

<mosaic_0001>
module attributes {stable_mosaic.version = 11 : i64} {
  func.func @_diffusion_kernel(%arg0: i32, %arg1: memref<8x128xf32, #tpu.memory_space<vmem>>, %arg2: memref<128x128xf32, #tpu.memory_space<vmem>>, %arg3: memref<128x256xf32, #tpu.memory_space<vmem>>, %arg4: memref<1x256xf32, #tpu.memory_space<vmem>>, %arg5: memref<256x128xf32, #tpu.memory_space<vmem>>, %arg6: memref<1x128xf32, #tpu.memory_space<vmem>>, %arg7: memref<128x128xf32, #tpu.memory_space<vmem>>, %arg8: memref<1x128xf32, #tpu.memory_space<vmem>>, %arg9: memref<128x128xf32, #tpu.memory_space<vmem>>, %arg10: memref<1x128xf32, #tpu.memory_space<vmem>>, %arg11: memref<128x128xf32, #tpu.memory_space<vmem>>, %arg12: memref<1x128xf32, #tpu.memory_space<vmem>>, %arg13: memref<8x128xf32, #tpu.memory_space<vmem>>) attributes {dimension_semantics = [#tpu.dimension_semantics<parallel>], iteration_bounds = array<i64: 1>, scalar_prefetch = 0 : i64, scratch_operands = 0 : i64, tpu.core_type = #tpu.core_type<tc>, window_params = [{transform_indices = @transform_0, window_bounds = array<i64: 8, 128>}, {pipeline_mode = #tpu.pipeline_mode<synchronous>, transform_indices = @transform_1, window_bounds = array<i64: 128, 128>}, {pipeline_mode = #tpu.pipeline_mode<synchronous>, transform_indices = @transform_2, window_bounds = array<i64: 128, 256>}, {pipeline_mode = #tpu.pipeline_mode<synchronous>, transform_indices = @transform_3, window_bounds = array<i64: 1, 256>}, {pipeline_mode = #tpu.pipeline_mode<synchronous>, transform_indices = @transform_4, window_bounds = array<i64: 256, 128>}, {pipeline_mode = #tpu.pipeline_mode<synchronous>, transform_indices = @transform_5, window_bounds = array<i64: 1, 128>}, {pipeline_mode = #tpu.pipeline_mode<synchronous>, transform_indices = @transform_6, window_bounds = array<i64: 128, 128>}, {pipeline_mode = #tpu.pipeline_mode<synchronous>, transform_indices = @transform_7, window_bounds = array<i64: 1, 128>}, {pipeline_mode = #tpu.pipeline_mode<synchronous>, transform_indices = @transform_8, window_bounds = array<i64: 128, 128>}, {pipeline_mode = #tpu.pipeline_mode<synchronous>, transform_indices = @transform_9, window_bounds = array<i64: 1, 128>}, {pipeline_mode = #tpu.pipeline_mode<synchronous>, transform_indices = @transform_10, window_bounds = array<i64: 128, 128>}, {pipeline_mode = #tpu.pipeline_mode<synchronous>, transform_indices = @transform_11, window_bounds = array<i64: 1, 128>}, {transform_indices = @transform_12, window_bounds = array<i64: 8, 128>}]} {
    %c0 = arith.constant 0 : index
    %c0_0 = arith.constant 0 : index
    %0 = vector.load %arg1[%c0, %c0_0] : memref<8x128xf32, #tpu.memory_space<vmem>>, vector<8x128xf32>
    %c0_1 = arith.constant 0 : index
    %c0_2 = arith.constant 0 : index
    %1 = vector.load %arg3[%c0_1, %c0_2] : memref<128x256xf32, #tpu.memory_space<vmem>>, vector<128x256xf32>
    %cst = arith.constant dense<0.000000e+00> : vector<8x256xf32>
    %2 = tpu.matmul %0, %1, %cst {dimension_numbers = #tpu.dot_dimension_numbers<[1], [0], [0], [1], [0, 0, 1, 1], [], []>} : vector<8x128xf32>, vector<128x256xf32>, vector<8x256xf32> -> vector<8x256xf32>
    %c0_3 = arith.constant 0 : index
    %c0_4 = arith.constant 0 : index
    %3 = vector.load %arg4[%c0_3, %c0_4] : memref<1x256xf32, #tpu.memory_space<vmem>>, vector<1x256xf32>
    %4 = vector.broadcast %3 : vector<1x256xf32> to vector<8x256xf32>
    %5 = arith.addf %2, %4 : vector<8x256xf32>
    %6 = arith.negf %5 : vector<8x256xf32>
    %7 = math.exp %6 : vector<8x256xf32>
    %cst_5 = arith.constant 1.000000e+00 : f32
    %8 = vector.broadcast %cst_5 : f32 to vector<8x256xf32>
    %9 = arith.addf %8, %7 : vector<8x256xf32>
    %10 = arith.divf %8, %9 : vector<8x256xf32>
    %11 = arith.mulf %5, %10 : vector<8x256xf32>
    %c0_6 = arith.constant 0 : index
    %c0_7 = arith.constant 0 : index
    %12 = vector.load %arg2[%c0_6, %c0_7] : memref<128x128xf32, #tpu.memory_space<vmem>>, vector<128x128xf32>
    %cst_8 = arith.constant dense<0.000000e+00> : vector<8x128xf32>
    %13 = tpu.matmul %0, %12, %cst_8 {dimension_numbers = #tpu.dot_dimension_numbers<[1], [0], [0], [1], [0, 0, 1, 1], [], []>} : vector<8x128xf32>, vector<128x128xf32>, vector<8x128xf32> -> vector<8x128xf32>
    %c0_9 = arith.constant 0 : index
    %c0_10 = arith.constant 0 : index
    %14 = vector.load %arg5[%c0_9, %c0_10] : memref<256x128xf32, #tpu.memory_space<vmem>>, vector<256x128xf32>
    %cst_11 = arith.constant dense<0.000000e+00> : vector<8x128xf32>
    %15 = tpu.matmul %11, %14, %cst_11 {dimension_numbers = #tpu.dot_dimension_numbers<[1], [0], [0], [1], [0, 0, 1, 1], [], []>} : vector<8x256xf32>, vector<256x128xf32>, vector<8x128xf32> -> vector<8x128xf32>
    %16 = arith.addf %13, %15 : vector<8x128xf32>
    %c0_12 = arith.constant 0 : index
    %c0_13 = arith.constant 0 : index
    %17 = vector.load %arg6[%c0_12, %c0_13] : memref<1x128xf32, #tpu.memory_space<vmem>>, vector<1x128xf32>
    %18 = vector.broadcast %17 : vector<1x128xf32> to vector<8x128xf32>
    %19 = arith.addf %16, %18 : vector<8x128xf32>
    %20 = arith.negf %19 : vector<8x128xf32>
    %21 = math.exp %20 : vector<8x128xf32>
    %cst_14 = arith.constant 1.000000e+00 : f32
    %22 = vector.broadcast %cst_14 : f32 to vector<8x128xf32>
    %23 = arith.addf %22, %21 : vector<8x128xf32>
    %24 = arith.divf %22, %23 : vector<8x128xf32>
    %25 = arith.mulf %19, %24 : vector<8x128xf32>
    %c0_15 = arith.constant 0 : index
    %c0_16 = arith.constant 0 : index
    %26 = vector.load %arg7[%c0_15, %c0_16] : memref<128x128xf32, #tpu.memory_space<vmem>>, vector<128x128xf32>
    %cst_17 = arith.constant dense<0.000000e+00> : vector<8x128xf32>
    %27 = tpu.matmul %25, %26, %cst_17 {dimension_numbers = #tpu.dot_dimension_numbers<[1], [0], [0], [1], [0, 0, 1, 1], [], []>} : vector<8x128xf32>, vector<128x128xf32>, vector<8x128xf32> -> vector<8x128xf32>
    %c0_18 = arith.constant 0 : index
    %c0_19 = arith.constant 0 : index
    %28 = vector.load %arg8[%c0_18, %c0_19] : memref<1x128xf32, #tpu.memory_space<vmem>>, vector<1x128xf32>
    %29 = vector.broadcast %28 : vector<1x128xf32> to vector<8x128xf32>
    %30 = arith.addf %27, %29 : vector<8x128xf32>
    %31 = arith.negf %30 : vector<8x128xf32>
    %32 = math.exp %31 : vector<8x128xf32>
    %cst_20 = arith.constant 1.000000e+00 : f32
    %33 = vector.broadcast %cst_20 : f32 to vector<8x128xf32>
    %34 = arith.addf %33, %32 : vector<8x128xf32>
    %35 = arith.divf %33, %34 : vector<8x128xf32>
    %36 = arith.mulf %30, %35 : vector<8x128xf32>
    %c0_21 = arith.constant 0 : index
    %c0_22 = arith.constant 0 : index
    %37 = vector.load %arg9[%c0_21, %c0_22] : memref<128x128xf32, #tpu.memory_space<vmem>>, vector<128x128xf32>
    %cst_23 = arith.constant dense<0.000000e+00> : vector<8x128xf32>
    %38 = tpu.matmul %36, %37, %cst_23 {dimension_numbers = #tpu.dot_dimension_numbers<[1], [0], [0], [1], [0, 0, 1, 1], [], []>} : vector<8x128xf32>, vector<128x128xf32>, vector<8x128xf32> -> vector<8x128xf32>
    %c0_24 = arith.constant 0 : index
    %c0_25 = arith.constant 0 : index
    %39 = vector.load %arg10[%c0_24, %c0_25] : memref<1x128xf32, #tpu.memory_space<vmem>>, vector<1x128xf32>
    %40 = vector.broadcast %39 : vector<1x128xf32> to vector<8x128xf32>
    %41 = arith.addf %38, %40 : vector<8x128xf32>
    %42 = arith.negf %41 : vector<8x128xf32>
    %43 = math.exp %42 : vector<8x128xf32>
    %cst_26 = arith.constant 1.000000e+00 : f32
    %44 = vector.broadcast %cst_26 : f32 to vector<8x128xf32>
    %45 = arith.addf %44, %43 : vector<8x128xf32>
    %46 = arith.divf %44, %45 : vector<8x128xf32>
    %47 = arith.mulf %41, %46 : vector<8x128xf32>
    %c0_27 = arith.constant 0 : index
    %c0_28 = arith.constant 0 : index
    %48 = vector.load %arg11[%c0_27, %c0_28] : memref<128x128xf32, #tpu.memory_space<vmem>>, vector<128x128xf32>
    %cst_29 = arith.constant dense<0.000000e+00> : vector<8x128xf32>
    %49 = tpu.matmul %47, %48, %cst_29 {dimension_numbers = #tpu.dot_dimension_numbers<[1], [0], [0], [1], [0, 0, 1, 1], [], []>} : vector<8x128xf32>, vector<128x128xf32>, vector<8x128xf32> -> vector<8x128xf32>
    %c0_30 = arith.constant 0 : index
    %c0_31 = arith.constant 0 : index
    %50 = vector.load %arg12[%c0_30, %c0_31] : memref<1x128xf32, #tpu.memory_space<vmem>>, vector<1x128xf32>
    %51 = vector.broadcast %50 : vector<1x128xf32> to vector<8x128xf32>
    %52 = arith.addf %49, %51 : vector<8x128xf32>
    %c0_32 = arith.constant 0 : index
    %c0_33 = arith.constant 0 : index
    %53 = vector.load %arg13[%c0_32, %c0_33] : memref<8x128xf32, #tpu.memory_space<vmem>>, vector<8x128xf32>
    tpu.vector_store %arg13[%c0_32, %c0_33], %52 {strides = array<i32>} : memref<8x128xf32, #tpu.memory_space<vmem>>, vector<8x128xf32>,
    return
  }
  func.func @transform_0(%arg0: i32) -> (i32, i32) {
    %c0_i32 = arith.constant 0 : i32
    %c0_i32_0 = arith.constant 0 : i32
    return %arg0, %c0_i32 : i32, i32
  }
  func.func @transform_1(%arg0: i32) -> (i32, i32) {
    %c0_i32 = arith.constant 0 : i32
    %c0_i32_0 = arith.constant 0 : i32
    %c0_i32_1 = arith.constant 0 : i32
    return %c0_i32, %c0_i32_0 : i32, i32
  }
  func.func @transform_2(%arg0: i32) -> (i32, i32) {
    %c0_i32 = arith.constant 0 : i32
    %c0_i32_0 = arith.constant 0 : i32
    %c0_i32_1 = arith.constant 0 : i32
    return %c0_i32, %c0_i32_0 : i32, i32
  }
  func.func @transform_3(%arg0: i32) -> (i32, i32) {
    %c0_i32 = arith.constant 0 : i32
    %c0_i32_0 = arith.constant 0 : i32
    %c0_i32_1 = arith.constant 0 : i32
    return %c0_i32, %c0_i32_0 : i32, i32
  }
  func.func @transform_4(%arg0: i32) -> (i32, i32) {
    %c0_i32 = arith.constant 0 : i32
    %c0_i32_0 = arith.constant 0 : i32
    %c0_i32_1 = arith.constant 0 : i32
    return %c0_i32, %c0_i32_0 : i32, i32
  }
  func.func @transform_5(%arg0: i32) -> (i32, i32) {
    %c0_i32 = arith.constant 0 : i32
    %c0_i32_0 = arith.constant 0 : i32
    %c0_i32_1 = arith.constant 0 : i32
    return %c0_i32, %c0_i32_0 : i32, i32
  }
  func.func @transform_6(%arg0: i32) -> (i32, i32) {
    %c0_i32 = arith.constant 0 : i32
    %c0_i32_0 = arith.constant 0 : i32
    %c0_i32_1 = arith.constant 0 : i32
    return %c0_i32, %c0_i32_0 : i32, i32
  }
  func.func @transform_7(%arg0: i32) -> (i32, i32) {
    %c0_i32 = arith.constant 0 : i32
    %c0_i32_0 = arith.constant 0 : i32
    %c0_i32_1 = arith.constant 0 : i32
    return %c0_i32, %c0_i32_0 : i32, i32
  }
  func.func @transform_8(%arg0: i32) -> (i32, i32) {
    %c0_i32 = arith.constant 0 : i32
    %c0_i32_0 = arith.constant 0 : i32
    %c0_i32_1 = arith.constant 0 : i32
    return %c0_i32, %c0_i32_0 : i32, i32
  }
  func.func @transform_9(%arg0: i32) -> (i32, i32) {
    %c0_i32 = arith.constant 0 : i32
    %c0_i32_0 = arith.constant 0 : i32
    %c0_i32_1 = arith.constant 0 : i32
    return %c0_i32, %c0_i32_0 : i32, i32
  }
  func.func @transform_10(%arg0: i32) -> (i32, i32) {
    %c0_i32 = arith.constant 0 : i32
    %c0_i32_0 = arith.constant 0 : i32
    %c0_i32_1 = arith.constant 0 : i32
    return %c0_i32, %c0_i32_0 : i32, i32
  }
  func.func @transform_11(%arg0: i32) -> (i32, i32) {
    %c0_i32 = arith.constant 0 : i32
    %c0_i32_0 = arith.constant 0 : i32
    %c0_i32_1 = arith.constant 0 : i32
    return %c0_i32, %c0_i32_0 : i32, i32
  }
  func.func @transform_12(%arg0: i32) -> (i32, i32) {
    %c0_i32 = arith.constant 0 : i32
    %c0_i32_0 = arith.constant 0 : i32
    return %arg0, %c0_i32 : i32, i32
  }
}

</mosaic_0001>

<llo_original>
// kernel: tpu_custom_call.1
$region0: #{tpu_custom_call.1}
  #allocation0 [shape = 'u32[]', space=smem, size = 0x4, offset = 0x4, fixed_abs, tag = 'smem constant byte address 0x4 - core index']
  #allocation1 [shape = 'u32[144,128]{1,0:T(1,128)}', space=vmem, size = 0x12000, scoped, tag = 'internal scratch']
  %s0 = inlined_call_operand.hbm [shape: f32[8,128], index: 0, kind: input, shape index: {}]
  %s1 = inlined_call_operand.hbm [shape: f32[128,128], index: 1, kind: input, shape index: {}]
  %s2 = inlined_call_operand.hbm [shape: f32[128,256], index: 2, kind: input, shape index: {}]
  %s3 = inlined_call_operand.vmem [shape: f32[1,256], index: 3, kind: input, shape index: {}]
  %s4 = inlined_call_operand.hbm [shape: f32[256,128], index: 4, kind: input, shape index: {}]
  %s5 = inlined_call_operand.vmem [shape: f32[1,128], index: 5, kind: input, shape index: {}]
  %s6 = inlined_call_operand.hbm [shape: f32[128,128], index: 6, kind: input, shape index: {}]
  %s7 = inlined_call_operand.vmem [shape: f32[1,128], index: 7, kind: input, shape index: {}]
  %s8 = inlined_call_operand.hbm [shape: f32[128,128], index: 8, kind: input, shape index: {}]
  %s9 = inlined_call_operand.vmem [shape: f32[1,128], index: 9, kind: input, shape index: {}]
  %s10 = inlined_call_operand.hbm [shape: f32[128,128], index: 10, kind: input, shape index: {}]
  %s11 = inlined_call_operand.vmem [shape: f32[1,128], index: 11, kind: input, shape index: {}]
  %s12 = inlined_call_operand.hbm [shape: f32[8,128], index: 12, kind: output, shape index: {}]
  %s13 = sld [smem:[#allocation0]]
  $region86: #{tpu_custom_call.1} parent=0
    _
  %s15 = ssub.s32 1, %s13
  %s16 = scalar_select 0, %s15, %s13
  $region1: #{tpu_custom_call.1} parent=0
    #allocation2 [shape = 'u8[4096]{0}', space=vmem, size = 0x1000, scoped, tag = 'input window, operand 0, single buffered']
    #allocation3 [shape = 's32[1]{0}', space=sflag, size = 0x4, scoped, tag = 'scoped memory for tpu_custom_call.1']
    #allocation4 [shape = 's32[1]{0}', space=sflag, size = 0x4, scoped, tag = 'scoped memory for tpu_custom_call.1']
    #allocation5 [shape = 'u8[65536]{0}', space=vmem, size = 0x10000, scoped, tag = 'input window, operand 1, single buffered']
    #allocation6 [shape = 's32[1]{0}', space=sflag, size = 0x4, scoped, tag = 'scoped memory for tpu_custom_call.1']
    #allocation7 [shape = 'u8[131072]{0}', space=vmem, size = 0x20000, scoped, tag = 'input window, operand 2, single buffered']
    #allocation8 [shape = 'u8[131072]{0}', space=vmem, size = 0x20000, scoped, tag = 'input window, operand 4, single buffered']
    #allocation9 [shape = 's32[1]{0}', space=sflag, size = 0x4, scoped, tag = 'scoped memory for tpu_custom_call.1']
    #allocation10 [shape = 'u8[65536]{0}', space=vmem, size = 0x10000, scoped, tag = 'input window, operand 6, single buffered']
    #allocation11 [shape = 'u8[65536]{0}', space=vmem, size = 0x10000, scoped, tag = 'input window, operand 8, single buffered']
    #allocation12 [shape = 's32[1]{0}', space=sflag, size = 0x4, scoped, tag = 'scoped memory for tpu_custom_call.1']
    #allocation13 [shape = 'u8[65536]{0}', space=vmem, size = 0x10000, scoped, tag = 'input window, operand 10, single buffered']
    #allocation14 [shape = 'u8[4096]{0}', space=vmem, size = 0x1000, scoped, tag = 'output window, operand 0, single buffered']
    %17 = vsyncpa [#allocation3], 0
    %18 = vsyncpa [#allocation6], 0
    %19 = vsyncpa [#allocation9], 0
    %20 = vsyncpa [#allocation12], 0
    %21 = vsyncpa [#allocation4], 0
    // Predicated region
    $region2: #{tpu_custom_call.1} parent=1 // pred_check
      _
    $region3: #{tpu_custom_call.1} parent=1 // pred_check_branch
      %23 = sbr.rel (0) target = $region5
    $region4: #{tpu_custom_call.1} parent=1 // pred_region
      %s25 = ssub.s32 128, 128
      %26 = vsyncadd [#allocation3], %s25
      %s28 = sshll.u32 [#allocation2], 4
      %s29 = int_to_ptr.vmem [resolvable:$true] %s28
      %31 = dma.hbm_to_vmem [thread:$0]  %s0, 128, %s29, [#allocation3]
    $region5: #{tpu_custom_call.1} parent=1 // pred_fallthru
      _
    // Predicated region
    $region6: #{tpu_custom_call.1} parent=1 // pred_check
      _
    $region7: #{tpu_custom_call.1} parent=1 // pred_check_branch
      %33 = sbr.rel (0) target = $region9
    $region8: #{tpu_custom_call.1} parent=1 // pred_region
      %s35 = ssub.s32 2048, 2048
      %36 = vsyncadd [#allocation6], %s35
      %s37 = sshll.u32 [#allocation5], 4
      %s38 = int_to_ptr.vmem [resolvable:$true] %s37
      %43 = dma.hbm_to_vmem [thread:$0]  %s1, 2048, %s38, [#allocation6], 128, 128, 8
    $region9: #{tpu_custom_call.1} parent=1 // pred_fallthru
      _
    // Predicated region
    $region10: #{tpu_custom_call.1} parent=1 // pred_check
      _
    $region11: #{tpu_custom_call.1} parent=1 // pred_check_branch
      %45 = sbr.rel (0) target = $region13
    $region12: #{tpu_custom_call.1} parent=1 // pred_region
      %s47 = ssub.s32 4096, 4096
      %48 = vsyncadd [#allocation6], %s47
      %s49 = sshll.u32 [#allocation7], 4
      %s50 = int_to_ptr.vmem [resolvable:$true] %s49
      %55 = dma.hbm_to_vmem [thread:$0]  %s2, 4096, %s50, [#allocation6], 256, 256, 16
    $region13: #{tpu_custom_call.1} parent=1 // pred_fallthru
      _
    // Predicated region
    $region14: #{tpu_custom_call.1} parent=1 // pred_check
      _
    $region15: #{tpu_custom_call.1} parent=1 // pred_check_branch
      %57 = sbr.rel (0) target = $region17
    $region16: #{tpu_custom_call.1} parent=1 // pred_region
      _
    $region17: #{tpu_custom_call.1} parent=1 // pred_fallthru
      _
    // Predicated region
    $region18: #{tpu_custom_call.1} parent=1 // pred_check
      _
    $region19: #{tpu_custom_call.1} parent=1 // pred_check_branch
      %59 = sbr.rel (0) target = $region21
    $region20: #{tpu_custom_call.1} parent=1 // pred_region
      %s61 = ssub.s32 4096, 4096
      %62 = vsyncadd [#allocation9], %s61
      %s63 = sshll.u32 [#allocation8], 4
      %s64 = int_to_ptr.vmem [resolvable:$true] %s63
      %69 = dma.hbm_to_vmem [thread:$0]  %s4, 4096, %s64, [#allocation9], 128, 128, 8
    $region21: #{tpu_custom_call.1} parent=1 // pred_fallthru
      _
    // Predicated region
    $region22: #{tpu_custom_call.1} parent=1 // pred_check
      _
    $region23: #{tpu_custom_call.1} parent=1 // pred_check_branch
      %71 = sbr.rel (0) target = $region25
    $region24: #{tpu_custom_call.1} parent=1 // pred_region
      _
    $region25: #{tpu_custom_call.1} parent=1 // pred_fallthru
      _
    // Predicated region
    $region26: #{tpu_custom_call.1} parent=1 // pred_check
      _
    $region27: #{tpu_custom_call.1} parent=1 // pred_check_branch
      %73 = sbr.rel (0) target = $region29
    $region28: #{tpu_custom_call.1} parent=1 // pred_region
      %s75 = ssub.s32 2048, 2048
      %76 = vsyncadd [#allocation9], %s75
      %s77 = sshll.u32 [#allocation10], 4
      %s78 = int_to_ptr.vmem [resolvable:$true] %s77
      %83 = dma.hbm_to_vmem [thread:$0]  %s6, 2048, %s78, [#allocation9], 128, 128, 8
    $region29: #{tpu_custom_call.1} parent=1 // pred_fallthru
      _
    // Predicated region
    $region30: #{tpu_custom_call.1} parent=1 // pred_check
      _
    $region31: #{tpu_custom_call.1} parent=1 // pred_check_branch
      %85 = sbr.rel (0) target = $region33
    $region32: #{tpu_custom_call.1} parent=1 // pred_region
      _
    $region33: #{tpu_custom_call.1} parent=1 // pred_fallthru
      _
    // Predicated region
    $region34: #{tpu_custom_call.1} parent=1 // pred_check
      _
    $region35: #{tpu_custom_call.1} parent=1 // pred_check_branch
      %87 = sbr.rel (0) target = $region37
    $region36: #{tpu_custom_call.1} parent=1 // pred_region
      %s89 = ssub.s32 2048, 2048
      %90 = vsyncadd [#allocation12], %s89
      %s91 = sshll.u32 [#allocation11], 4
      %s92 = int_to_ptr.vmem [resolvable:$true] %s91
      %97 = dma.hbm_to_vmem [thread:$0]  %s8, 2048, %s92, [#allocation12], 128, 128, 8
    $region37: #{tpu_custom_call.1} parent=1 // pred_fallthru
      _
    // Predicated region
    $region38: #{tpu_custom_call.1} parent=1 // pred_check
      _
    $region39: #{tpu_custom_call.1} parent=1 // pred_check_branch
      %99 = sbr.rel (0) target = $region41
    $region40: #{tpu_custom_call.1} parent=1 // pred_region
      _
    $region41: #{tpu_custom_call.1} parent=1 // pred_fallthru
      _
    // Predicated region
    $region42: #{tpu_custom_call.1} parent=1 // pred_check
      _
    $region43: #{tpu_custom_call.1} parent=1 // pred_check_branch
      %101 = sbr.rel (0) target = $region45
    $region44: #{tpu_custom_call.1} parent=1 // pred_region
      %s103 = ssub.s32 2048, 2048
      %104 = vsyncadd [#allocation12], %s103
      %s105 = sshll.u32 [#allocation13], 4
      %s106 = int_to_ptr.vmem [resolvable:$true] %s105
      %111 = dma.hbm_to_vmem [thread:$0]  %s10, 2048, %s106, [#allocation12], 128, 128, 8
    $region45: #{tpu_custom_call.1} parent=1 // pred_fallthru
      _
    // Predicated region
    $region46: #{tpu_custom_call.1} parent=1 // pred_check
      _
    $region47: #{tpu_custom_call.1} parent=1 // pred_check_branch
      %113 = sbr.rel (0) target = $region49
    $region48: #{tpu_custom_call.1} parent=1 // pred_region
      _
    $region49: #{tpu_custom_call.1} parent=1 // pred_fallthru
      _
    // Predicated region
    $region50: #{tpu_custom_call.1} parent=1 // pred_check
      _
    $region51: #{tpu_custom_call.1} parent=1 // pred_check_branch
      %115 = sbr.rel (0) target = $region53
    $region52: #{tpu_custom_call.1} parent=1 // pred_region
      %116 = dma.done [#allocation3], 128
    $region53: #{tpu_custom_call.1} parent=1 // pred_fallthru
      _
    // Predicated region
    $region54: #{tpu_custom_call.1} parent=1 // pred_check
      _
    $region55: #{tpu_custom_call.1} parent=1 // pred_check_branch
      %118 = sbr.rel (0) target = $region57
    $region56: #{tpu_custom_call.1} parent=1 // pred_region
      %119 = dma.done [#allocation6], 2048
    $region57: #{tpu_custom_call.1} parent=1 // pred_fallthru
      _
    // Predicated region
    $region58: #{tpu_custom_call.1} parent=1 // pred_check
      _
    $region59: #{tpu_custom_call.1} parent=1 // pred_check_branch
      %121 = sbr.rel (0) target = $region61
    $region60: #{tpu_custom_call.1} parent=1 // pred_region
      %122 = dma.done [#allocation6], 4096
    $region61: #{tpu_custom_call.1} parent=1 // pred_fallthru
      _
    // Predicated region
    $region62: #{tpu_custom_call.1} parent=1 // pred_check
      _
    $region63: #{tpu_custom_call.1} parent=1 // pred_check_branch
      %124 = sbr.rel (0) target = $region65
    $region64: #{tpu_custom_call.1} parent=1 // pred_region
      %125 = dma.done [#allocation9], 4096
    $region65: #{tpu_custom_call.1} parent=1 // pred_fallthru
      _
    // Predicated region
    $region66: #{tpu_custom_call.1} parent=1 // pred_check
      _
    $region67: #{tpu_custom_call.1} parent=1 // pred_check_branch
      %127 = sbr.rel (0) target = $region69
    $region68: #{tpu_custom_call.1} parent=1 // pred_region
      %128 = dma.done [#allocation9], 2048
    $region69: #{tpu_custom_call.1} parent=1 // pred_fallthru
      _
    // Predicated region
    $region70: #{tpu_custom_call.1} parent=1 // pred_check
      _
    $region71: #{tpu_custom_call.1} parent=1 // pred_check_branch
      %130 = sbr.rel (0) target = $region73
    $region72: #{tpu_custom_call.1} parent=1 // pred_region
      %131 = dma.done [#allocation12], 2048
    $region73: #{tpu_custom_call.1} parent=1 // pred_fallthru
      _
    // Predicated region
    $region74: #{tpu_custom_call.1} parent=1 // pred_check
      _
    $region75: #{tpu_custom_call.1} parent=1 // pred_check_branch
      %133 = sbr.rel (0) target = $region77
    $region76: #{tpu_custom_call.1} parent=1 // pred_region
      %134 = dma.done [#allocation12], 2048
    $region77: #{tpu_custom_call.1} parent=1 // pred_fallthru
      _
    %v135 = vld [vmem:[#allocation2] sm:$0xff]
    %v136 = vld [vmem:[#allocation7] sm:$0xff]
    %v137 = vld [vmem:[#allocation7 + $0x8] sm:$0xff]
    %v138 = vld [vmem:[#allocation7 + $0x10] sm:$0xff]
    %v139 = vld [vmem:[#allocation7 + $0x18] sm:$0xff]
    %v140 = vld [vmem:[#allocation7 + $0x20] sm:$0xff]
    %v141 = vld [vmem:[#allocation7 + $0x28] sm:$0xff]
    %v142 = vld [vmem:[#allocation7 + $0x30] sm:$0xff]
    %v143 = vld [vmem:[#allocation7 + $0x38] sm:$0xff]
    %v144 = vld [vmem:[#allocation7 + $0x40] sm:$0xff]
    %v145 = vld [vmem:[#allocation7 + $0x48] sm:$0xff]
    %v146 = vld [vmem:[#allocation7 + $0x50] sm:$0xff]
    %v147 = vld [vmem:[#allocation7 + $0x58] sm:$0xff]
    %v148 = vld [vmem:[#allocation7 + $0x60] sm:$0xff]
    %v149 = vld [vmem:[#allocation7 + $0x68] sm:$0xff]
    %v150 = vld [vmem:[#allocation7 + $0x70] sm:$0xff]
    %v151 = vld [vmem:[#allocation7 + $0x78] sm:$0xff]
    %v152 = vld [vmem:[#allocation7 + $0x80] sm:$0xff]
    %v153 = vld [vmem:[#allocation7 + $0x88] sm:$0xff]
    %v154 = vld [vmem:[#allocation7 + $0x90] sm:$0xff]
    %v155 = vld [vmem:[#allocation7 + $0x98] sm:$0xff]
    %v156 = vld [vmem:[#allocation7 + $0xa0] sm:$0xff]
    %v157 = vld [vmem:[#allocation7 + $0xa8] sm:$0xff]
    %v158 = vld [vmem:[#allocation7 + $0xb0] sm:$0xff]
    %v159 = vld [vmem:[#allocation7 + $0xb8] sm:$0xff]
    %v160 = vld [vmem:[#allocation7 + $0xc0] sm:$0xff]
    %v161 = vld [vmem:[#allocation7 + $0xc8] sm:$0xff]
    %v162 = vld [vmem:[#allocation7 + $0xd0] sm:$0xff]
    %v163 = vld [vmem:[#allocation7 + $0xd8] sm:$0xff]
    %v164 = vld [vmem:[#allocation7 + $0xe0] sm:$0xff]
    %v165 = vld [vmem:[#allocation7 + $0xe8] sm:$0xff]
    %v166 = vld [vmem:[#allocation7 + $0xf0] sm:$0xff]
    %v167 = vld [vmem:[#allocation7 + $0xf8] sm:$0xff]
    %v168 = vld [vmem:[%s3] sm:$0x3]
    %v170 = vlaneseq
    %v171 = vshrl.u32 %v170, 7
    %v172 = vsub.s32 0, %v171
    %v173 = vrot.slane %v168, %v172
    %v174 = vlaneseq
    %v175 = vshrl.u32 %v174, 7
    %v176 = vsub.s32 1, %v175
    %v177 = vrot.slane %v168, %v176
    %180 = vmatprep.subr.mxu0 %v167
    %181 = vmatpush1.msra.mxu0 %v166
    %182 = vmatprep.subr.mxu0 %v165
    %183 = vmatpush1.msra.mxu0 %v164
    %184 = vmatprep.subr.mxu0 %v163
    %185 = vmatpush1.msra.mxu0 %v162
    %186 = vmatprep.subr.mxu0 %v161
    %187 = vmatpush1.msra.mxu0 %v160
    %188 = vmatprep.subr.mxu0 %v159
    %189 = vmatpush1.msra.mxu0 %v158
    %190 = vmatprep.subr.mxu0 %v157
    %191 = vmatpush1.msra.mxu0 %v156
    %192 = vmatprep.subr.mxu0 %v155
    %193 = vmatpush1.msra.mxu0 %v154
    %194 = vmatprep.subr.mxu0 %v153
    %195 = vmatpush1.msra.mxu0 %v152
    %196 = vmatprep.subr.mxu0 %v151
    %197 = vmatpush1.msra.mxu0 %v150
    %198 = vmatprep.subr.mxu0 %v149
    %199 = vmatpush1.msra.mxu0 %v148
    %200 = vmatprep.subr.mxu0 %v147
    %201 = vmatpush1.msra.mxu0 %v146
    %202 = vmatprep.subr.mxu0 %v145
    %203 = vmatpush1.msra.mxu0 %v144
    %204 = vmatprep.subr.mxu0 %v143
    %205 = vmatpush1.msra.mxu0 %v142
    %206 = vmatprep.subr.mxu0 %v141
    %207 = vmatpush1.msra.mxu0 %v140
    %208 = vmatprep.subr.mxu0 %v139
    %209 = vmatpush1.msra.mxu0 %v138
    %210 = vmatprep.subr.mxu0 %v137
    %211 = vmatpush1.msra.mxu0 %v136
    %212 = vmatprep.subr.mxu0 0.0
    %213 = vmatpush2.msra.mxu0 0.0
    %214 = vmatprep.subr.mxu0 0.0
    %215 = vmatpush2.msra.mxu0 0.0
    %216 = vmatprep.subr.mxu0 0.0
    %217 = vmatpush2.msra.mxu0 0.0
    %218 = vmatprep.subr.mxu0 0.0
    %219 = vmatpush2.msra.mxu0 0.0
    %220 = vmatprep.subr.mxu0 0.0
    %221 = vmatpush2.msra.mxu0 0.0
    %222 = vmatprep.subr.mxu0 0.0
    %223 = vmatpush2.msra.mxu0 0.0
    %224 = vmatprep.subr.mxu0 0.0
    %225 = vmatpush2.msra.mxu0 0.0
    %226 = vmatprep.subr.mxu0 0.0
    %227 = vmatpush2.msra.mxu0 0.0
    %228 = vmatprep.subr.mxu0 0.0
    %229 = vmatpush2.msra.mxu0 0.0
    %230 = vmatprep.subr.mxu0 0.0
    %231 = vmatpush2.msra.mxu0 0.0
    %232 = vmatprep.subr.mxu0 0.0
    %233 = vmatpush2.msra.mxu0 0.0
    %234 = vmatprep.subr.mxu0 0.0
    %235 = vmatpush2.msra.mxu0 0.0
    %236 = vmatprep.subr.mxu0 0.0
    %237 = vmatpush2.msra.mxu0 0.0
    %238 = vmatprep.subr.mxu0 0.0
    %239 = vmatpush2.msra.mxu0 0.0
    %240 = vmatprep.subr.mxu0 0.0
    %241 = vmatpush2.msra.mxu0 0.0
    %242 = vmatprep.subr.mxu0 0.0
    %243 = vmatpush2.msra.mxu0 0.0
    %244 = vmatprep.mubr.f32.mxu0 0.0
    %245 = vmatmul.mubr.f32.gmra.mxu0 %v135
    %v246 = vpop.f32.mrf.mxu0
    %v247 = vadd.f32 %v173, %v246
    %v248 = vpop.f32.mrf.mxu0
    %v249 = vadd.f32 %v177, %v248
    %250 = vdwg.mxu0
    %v251 = vxor.u32 %v247, 2147483648
    %v252 = vxor.u32 %v249, 2147483648
    %v253 = vmul.f32 %v251, 1.442695
    %v254 = vpow.pop %v253
    %v255 = vmul.f32 %v252, 1.442695
    %v256 = vpow.pop %v255
    %v257 = vadd.f32 %v254, 1.0
    %v258 = vadd.f32 %v256, 1.0
    %v259 = vrcp.pop %v257
    %v260 = vmul.f32 1.0, %v259
    %v261 = vrcp.pop %v258
    %v262 = vmul.f32 1.0, %v261
    %v263 = vmul.f32 %v247, %v260
    %v264 = vmul.f32 %v249, %v262
    %v265 = vld [vmem:[#allocation5] sm:$0xff]
    %v266 = vld [vmem:[#allocation5 + $0x8] sm:$0xff]
    %v267 = vld [vmem:[#allocation5 + $0x10] sm:$0xff]
    %v268 = vld [vmem:[#allocation5 + $0x18] sm:$0xff]
    %v269 = vld [vmem:[#allocation5 + $0x20] sm:$0xff]
    %v270 = vld [vmem:[#allocation5 + $0x28] sm:$0xff]
    %v271 = vld [vmem:[#allocation5 + $0x30] sm:$0xff]
    %v272 = vld [vmem:[#allocation5 + $0x38] sm:$0xff]
    %v273 = vld [vmem:[#allocation5 + $0x40] sm:$0xff]
    %v274 = vld [vmem:[#allocation5 + $0x48] sm:$0xff]
    %v275 = vld [vmem:[#allocation5 + $0x50] sm:$0xff]
    %v276 = vld [vmem:[#allocation5 + $0x58] sm:$0xff]
    %v277 = vld [vmem:[#allocation5 + $0x60] sm:$0xff]
    %v278 = vld [vmem:[#allocation5 + $0x68] sm:$0xff]
    %v279 = vld [vmem:[#allocation5 + $0x70] sm:$0xff]
    %v280 = vld [vmem:[#allocation5 + $0x78] sm:$0xff]
    %v281 = vld [vmem:[#allocation8] sm:$0xff]
    %v282 = vld [vmem:[#allocation8 + $0x8] sm:$0xff]
    %v283 = vld [vmem:[#allocation8 + $0x10] sm:$0xff]
    %v284 = vld [vmem:[#allocation8 + $0x18] sm:$0xff]
    %v285 = vld [vmem:[#allocation8 + $0x20] sm:$0xff]
    %v286 = vld [vmem:[#allocation8 + $0x28] sm:$0xff]
    %v287 = vld [vmem:[#allocation8 + $0x30] sm:$0xff]
    %v288 = vld [vmem:[#allocation8 + $0x38] sm:$0xff]
    %v289 = vld [vmem:[#allocation8 + $0x40] sm:$0xff]
    %v290 = vld [vmem:[#allocation8 + $0x48] sm:$0xff]
    %v291 = vld [vmem:[#allocation8 + $0x50] sm:$0xff]
    %v292 = vld [vmem:[#allocation8 + $0x58] sm:$0xff]
    %v293 = vld [vmem:[#allocation8 + $0x60] sm:$0xff]
    %v294 = vld [vmem:[#allocation8 + $0x68] sm:$0xff]
    %v295 = vld [vmem:[#allocation8 + $0x70] sm:$0xff]
    %v296 = vld [vmem:[#allocation8 + $0x78] sm:$0xff]
    %v297 = vld [vmem:[#allocation8 + $0x80] sm:$0xff]
    %v298 = vld [vmem:[#allocation8 + $0x88] sm:$0xff]
    %v299 = vld [vmem:[#allocation8 + $0x90] sm:$0xff]
    %v300 = vld [vmem:[#allocation8 + $0x98] sm:$0xff]
    %v301 = vld [vmem:[#allocation8 + $0xa0] sm:$0xff]
    %v302 = vld [vmem:[#allocation8 + $0xa8] sm:$0xff]
    %v303 = vld [vmem:[#allocation8 + $0xb0] sm:$0xff]
    %v304 = vld [vmem:[#allocation8 + $0xb8] sm:$0xff]
    %v305 = vld [vmem:[#allocation8 + $0xc0] sm:$0xff]
    %v306 = vld [vmem:[#allocation8 + $0xc8] sm:$0xff]
    %v307 = vld [vmem:[#allocation8 + $0xd0] sm:$0xff]
    %v308 = vld [vmem:[#allocation8 + $0xd8] sm:$0xff]
    %v309 = vld [vmem:[#allocation8 + $0xe0] sm:$0xff]
    %v310 = vld [vmem:[#allocation8 + $0xe8] sm:$0xff]
    %v311 = vld [vmem:[#allocation8 + $0xf0] sm:$0xff]
    %v312 = vld [vmem:[#allocation8 + $0xf8] sm:$0xff]
    %313 = vmatprep.subr.mxu0 0.0
    %314 = vmatpush1.msra.mxu0 %v296
    %315 = vmatprep.subr.mxu0 0.0
    %316 = vmatpush1.msra.mxu0 %v295
    %317 = vmatprep.subr.mxu0 0.0
    %318 = vmatpush1.msra.mxu0 %v294
    %319 = vmatprep.subr.mxu0 0.0
    %320 = vmatpush1.msra.mxu0 %v293
    %321 = vmatprep.subr.mxu0 0.0
    %322 = vmatpush1.msra.mxu0 %v292
    %323 = vmatprep.subr.mxu0 0.0
    %324 = vmatpush1.msra.mxu0 %v291
    %325 = vmatprep.subr.mxu0 0.0
    %326 = vmatpush1.msra.mxu0 %v290
    %327 = vmatprep.subr.mxu0 0.0
    %328 = vmatpush1.msra.mxu0 %v289
    %329 = vmatprep.subr.mxu0 0.0
    %330 = vmatpush1.msra.mxu0 %v288
    %331 = vmatprep.subr.mxu0 0.0
    %332 = vmatpush1.msra.mxu0 %v287
    %333 = vmatprep.subr.mxu0 0.0
    %334 = vmatpush1.msra.mxu0 %v286
    %335 = vmatprep.subr.mxu0 0.0
    %336 = vmatpush1.msra.mxu0 %v285
    %337 = vmatprep.subr.mxu0 0.0
    %338 = vmatpush1.msra.mxu0 %v284
    %339 = vmatprep.subr.mxu0 0.0
    %340 = vmatpush1.msra.mxu0 %v283
    %341 = vmatprep.subr.mxu0 0.0
    %342 = vmatpush1.msra.mxu0 %v282
    %343 = vmatprep.subr.mxu0 0.0
    %344 = vmatpush1.msra.mxu0 %v281
    %345 = vmatprep.subr.mxu0 0.0
    %346 = vmatpush2.msra.mxu0 %v312
    %347 = vmatprep.subr.mxu0 0.0
    %348 = vmatpush2.msra.mxu0 %v311
    %349 = vmatprep.subr.mxu0 0.0
    %350 = vmatpush2.msra.mxu0 %v310
    %351 = vmatprep.subr.mxu0 0.0
    %352 = vmatpush2.msra.mxu0 %v309
    %353 = vmatprep.subr.mxu0 0.0
    %354 = vmatpush2.msra.mxu0 %v308
    %355 = vmatprep.subr.mxu0 0.0
    %356 = vmatpush2.msra.mxu0 %v307
    %357 = vmatprep.subr.mxu0 0.0
    %358 = vmatpush2.msra.mxu0 %v306
    %359 = vmatprep.subr.mxu0 0.0
    %360 = vmatpush2.msra.mxu0 %v305
    %361 = vmatprep.subr.mxu0 0.0
    %362 = vmatpush2.msra.mxu0 %v304
    %363 = vmatprep.subr.mxu0 0.0
    %364 = vmatpush2.msra.mxu0 %v303
    %365 = vmatprep.subr.mxu0 0.0
    %366 = vmatpush2.msra.mxu0 %v302
    %367 = vmatprep.subr.mxu0 0.0
    %368 = vmatpush2.msra.mxu0 %v301
    %369 = vmatprep.subr.mxu0 0.0
    %370 = vmatpush2.msra.mxu0 %v300
    %371 = vmatprep.subr.mxu0 0.0
    %372 = vmatpush2.msra.mxu0 %v299
    %373 = vmatprep.subr.mxu0 0.0
    %374 = vmatpush2.msra.mxu0 %v298
    %375 = vmatprep.subr.mxu0 0.0
    %376 = vmatpush2.msra.mxu0 %v297
    %377 = vmatprep.mubr.f32.mxu0 %v264
    %378 = vmatmul.mubr.f32.gmra.mxu0 %v263
    %v379 = vpop.f32.mrf.mxu0
    %v380 = vadd.f32 0.0, %v379
    %v381 = vpop.f32.mrf.mxu0
    %382 = vdwg.mxu0
    %383 = vmatprep.subr.mxu0 0.0
    %384 = vmatpush1.msra.mxu0 %v280
    %385 = vmatprep.subr.mxu0 0.0
    %386 = vmatpush1.msra.mxu0 %v279
    %387 = vmatprep.subr.mxu0 0.0
    %388 = vmatpush1.msra.mxu0 %v278
    %389 = vmatprep.subr.mxu0 0.0
    %390 = vmatpush1.msra.mxu0 %v277
    %391 = vmatprep.subr.mxu0 0.0
    %392 = vmatpush1.msra.mxu0 %v276
    %393 = vmatprep.subr.mxu0 0.0
    %394 = vmatpush1.msra.mxu0 %v275
    %395 = vmatprep.subr.mxu0 0.0
    %396 = vmatpush1.msra.mxu0 %v274
    %397 = vmatprep.subr.mxu0 0.0
    %398 = vmatpush1.msra.mxu0 %v273
    %399 = vmatprep.subr.mxu0 0.0
    %400 = vmatpush1.msra.mxu0 %v272
    %401 = vmatprep.subr.mxu0 0.0
    %402 = vmatpush1.msra.mxu0 %v271
    %403 = vmatprep.subr.mxu0 0.0
    %404 = vmatpush1.msra.mxu0 %v270
    %405 = vmatprep.subr.mxu0 0.0
    %406 = vmatpush1.msra.mxu0 %v269
    %407 = vmatprep.subr.mxu0 0.0
    %408 = vmatpush1.msra.mxu0 %v268
    %409 = vmatprep.subr.mxu0 0.0
    %410 = vmatpush1.msra.mxu0 %v267
    %411 = vmatprep.subr.mxu0 0.0
    %412 = vmatpush1.msra.mxu0 %v266
    %413 = vmatprep.subr.mxu0 0.0
    %414 = vmatpush1.msra.mxu0 %v265
    %415 = vmatprep.subr.mxu0 0.0
    %416 = vmatpush2.msra.mxu0 0.0
    %417 = vmatprep.subr.mxu0 0.0
    %418 = vmatpush2.msra.mxu0 0.0
    %419 = vmatprep.subr.mxu0 0.0
    %420 = vmatpush2.msra.mxu0 0.0
    %421 = vmatprep.subr.mxu0 0.0
    %422 = vmatpush2.msra.mxu0 0.0
    %423 = vmatprep.subr.mxu0 0.0
    %424 = vmatpush2.msra.mxu0 0.0
    %425 = vmatprep.subr.mxu0 0.0
    %426 = vmatpush2.msra.mxu0 0.0
    %427 = vmatprep.subr.mxu0 0.0
    %428 = vmatpush2.msra.mxu0 0.0
    %429 = vmatprep.subr.mxu0 0.0
    %430 = vmatpush2.msra.mxu0 0.0
    %431 = vmatprep.subr.mxu0 0.0
    %432 = vmatpush2.msra.mxu0 0.0
    %433 = vmatprep.subr.mxu0 0.0
    %434 = vmatpush2.msra.mxu0 0.0
    %435 = vmatprep.subr.mxu0 0.0
    %436 = vmatpush2.msra.mxu0 0.0
    %437 = vmatprep.subr.mxu0 0.0
    %438 = vmatpush2.msra.mxu0 0.0
    %439 = vmatprep.subr.mxu0 0.0
    %440 = vmatpush2.msra.mxu0 0.0
    %441 = vmatprep.subr.mxu0 0.0
    %442 = vmatpush2.msra.mxu0 0.0
    %443 = vmatprep.subr.mxu0 0.0
    %444 = vmatpush2.msra.mxu0 0.0
    %445 = vmatprep.subr.mxu0 0.0
    %446 = vmatpush2.msra.mxu0 0.0
    %447 = vmatprep.mubr.f32.mxu0 0.0
    %448 = vmatmul.mubr.f32.gmra.mxu0 %v135
    %v449 = vpop.f32.mrf.mxu0
    %v450 = vadd.f32 %v380, %v449
    %v451 = vpop.f32.mrf.mxu0
    %452 = vdwg.mxu0
    %v453 = vld [vmem:[%s5] sm:$0x1]
    %v455 = vlaneseq
    %v456 = vshrl.u32 %v455, 7
    %v457 = vsub.s32 0, %v456
    %v458 = vrot.slane %v453, %v457
    %v460 = vadd.f32 %v450, %v458
    %v461 = vxor.u32 %v460, 2147483648
    %v462 = vmul.f32 %v461, 1.442695
    %v463 = vpow.pop %v462
    %v464 = vadd.f32 %v463, 1.0
    %v465 = vrcp.pop %v464
    %v466 = vmul.f32 1.0, %v465
    %v467 = vmul.f32 %v460, %v466
    %v468 = vld [vmem:[#allocation10] sm:$0xff]
    %v469 = vld [vmem:[#allocation10 + $0x8] sm:$0xff]
    %v470 = vld [vmem:[#allocation10 + $0x10] sm:$0xff]
    %v471 = vld [vmem:[#allocation10 + $0x18] sm:$0xff]
    %v472 = vld [vmem:[#allocation10 + $0x20] sm:$0xff]
    %v473 = vld [vmem:[#allocation10 + $0x28] sm:$0xff]
    %v474 = vld [vmem:[#allocation10 + $0x30] sm:$0xff]
    %v475 = vld [vmem:[#allocation10 + $0x38] sm:$0xff]
    %v476 = vld [vmem:[#allocation10 + $0x40] sm:$0xff]
    %v477 = vld [vmem:[#allocation10 + $0x48] sm:$0xff]
    %v478 = vld [vmem:[#allocation10 + $0x50] sm:$0xff]
    %v479 = vld [vmem:[#allocation10 + $0x58] sm:$0xff]
    %v480 = vld [vmem:[#allocation10 + $0x60] sm:$0xff]
    %v481 = vld [vmem:[#allocation10 + $0x68] sm:$0xff]
    %v482 = vld [vmem:[#allocation10 + $0x70] sm:$0xff]
    %v483 = vld [vmem:[#allocation10 + $0x78] sm:$0xff]
    %v484 = vld [vmem:[%s7] sm:$0x1]
    %v486 = vlaneseq
    %v487 = vshrl.u32 %v486, 7
    %v488 = vsub.s32 0, %v487
    %v489 = vrot.slane %v484, %v488
    %491 = vmatprep.subr.mxu0 0.0
    %492 = vmatpush1.msra.mxu0 %v483
    %493 = vmatprep.subr.mxu0 0.0
    %494 = vmatpush1.msra.mxu0 %v482
    %495 = vmatprep.subr.mxu0 0.0
    %496 = vmatpush1.msra.mxu0 %v481
    %497 = vmatprep.subr.mxu0 0.0
    %498 = vmatpush1.msra.mxu0 %v480
    %499 = vmatprep.subr.mxu0 0.0
    %500 = vmatpush1.msra.mxu0 %v479
    %501 = vmatprep.subr.mxu0 0.0
    %502 = vmatpush1.msra.mxu0 %v478
    %503 = vmatprep.subr.mxu0 0.0
    %504 = vmatpush1.msra.mxu0 %v477
    %505 = vmatprep.subr.mxu0 0.0
    %506 = vmatpush1.msra.mxu0 %v476
    %507 = vmatprep.subr.mxu0 0.0
    %508 = vmatpush1.msra.mxu0 %v475
    %509 = vmatprep.subr.mxu0 0.0
    %510 = vmatpush1.msra.mxu0 %v474
    %511 = vmatprep.subr.mxu0 0.0
    %512 = vmatpush1.msra.mxu0 %v473
    %513 = vmatprep.subr.mxu0 0.0
    %514 = vmatpush1.msra.mxu0 %v472
    %515 = vmatprep.subr.mxu0 0.0
    %516 = vmatpush1.msra.mxu0 %v471
    %517 = vmatprep.subr.mxu0 0.0
    %518 = vmatpush1.msra.mxu0 %v470
    %519 = vmatprep.subr.mxu0 0.0
    %520 = vmatpush1.msra.mxu0 %v469
    %521 = vmatprep.subr.mxu0 0.0
    %522 = vmatpush1.msra.mxu0 %v468
    %523 = vmatprep.subr.mxu0 0.0
    %524 = vmatpush2.msra.mxu0 0.0
    %525 = vmatprep.subr.mxu0 0.0
    %526 = vmatpush2.msra.mxu0 0.0
    %527 = vmatprep.subr.mxu0 0.0
    %528 = vmatpush2.msra.mxu0 0.0
    %529 = vmatprep.subr.mxu0 0.0
    %530 = vmatpush2.msra.mxu0 0.0
    %531 = vmatprep.subr.mxu0 0.0
    %532 = vmatpush2.msra.mxu0 0.0
    %533 = vmatprep.subr.mxu0 0.0
    %534 = vmatpush2.msra.mxu0 0.0
    %535 = vmatprep.subr.mxu0 0.0
    %536 = vmatpush2.msra.mxu0 0.0
    %537 = vmatprep.subr.mxu0 0.0
    %538 = vmatpush2.msra.mxu0 0.0
    %539 = vmatprep.subr.mxu0 0.0
    %540 = vmatpush2.msra.mxu0 0.0
    %541 = vmatprep.subr.mxu0 0.0
    %542 = vmatpush2.msra.mxu0 0.0
    %543 = vmatprep.subr.mxu0 0.0
    %544 = vmatpush2.msra.mxu0 0.0
    %545 = vmatprep.subr.mxu0 0.0
    %546 = vmatpush2.msra.mxu0 0.0
    %547 = vmatprep.subr.mxu0 0.0
    %548 = vmatpush2.msra.mxu0 0.0
    %549 = vmatprep.subr.mxu0 0.0
    %550 = vmatpush2.msra.mxu0 0.0
    %551 = vmatprep.subr.mxu0 0.0
    %552 = vmatpush2.msra.mxu0 0.0
    %553 = vmatprep.subr.mxu0 0.0
    %554 = vmatpush2.msra.mxu0 0.0
    %555 = vmatprep.mubr.f32.mxu0 0.0
    %556 = vmatmul.mubr.f32.gmra.mxu0 %v467
    %v557 = vpop.f32.mrf.mxu0
    %v558 = vadd.f32 %v489, %v557
    %v559 = vpop.f32.mrf.mxu0
    %560 = vdwg.mxu0
    %v561 = vxor.u32 %v558, 2147483648
    %v562 = vmul.f32 %v561, 1.442695
    %v563 = vpow.pop %v562
    %v564 = vadd.f32 %v563, 1.0
    %v565 = vrcp.pop %v564
    %v566 = vmul.f32 1.0, %v565
    %v567 = vmul.f32 %v558, %v566
    %v568 = vld [vmem:[#allocation11] sm:$0xff]
    %v569 = vld [vmem:[#allocation11 + $0x8] sm:$0xff]
    %v570 = vld [vmem:[#allocation11 + $0x10] sm:$0xff]
    %v571 = vld [vmem:[#allocation11 + $0x18] sm:$0xff]
    %v572 = vld [vmem:[#allocation11 + $0x20] sm:$0xff]
    %v573 = vld [vmem:[#allocation11 + $0x28] sm:$0xff]
    %v574 = vld [vmem:[#allocation11 + $0x30] sm:$0xff]
    %v575 = vld [vmem:[#allocation11 + $0x38] sm:$0xff]
    %v576 = vld [vmem:[#allocation11 + $0x40] sm:$0xff]
    %v577 = vld [vmem:[#allocation11 + $0x48] sm:$0xff]
    %v578 = vld [vmem:[#allocation11 + $0x50] sm:$0xff]
    %v579 = vld [vmem:[#allocation11 + $0x58] sm:$0xff]
    %v580 = vld [vmem:[#allocation11 + $0x60] sm:$0xff]
    %v581 = vld [vmem:[#allocation11 + $0x68] sm:$0xff]
    %v582 = vld [vmem:[#allocation11 + $0x70] sm:$0xff]
    %v583 = vld [vmem:[#allocation11 + $0x78] sm:$0xff]
    %v584 = vld [vmem:[%s9] sm:$0x1]
    %v586 = vlaneseq
    %v587 = vshrl.u32 %v586, 7
    %v588 = vsub.s32 0, %v587
    %v589 = vrot.slane %v584, %v588
    %591 = vmatprep.subr.mxu0 0.0
    %592 = vmatpush1.msra.mxu0 %v583
    %593 = vmatprep.subr.mxu0 0.0
    %594 = vmatpush1.msra.mxu0 %v582
    %595 = vmatprep.subr.mxu0 0.0
    %596 = vmatpush1.msra.mxu0 %v581
    %597 = vmatprep.subr.mxu0 0.0
    %598 = vmatpush1.msra.mxu0 %v580
    %599 = vmatprep.subr.mxu0 0.0
    %600 = vmatpush1.msra.mxu0 %v579
    %601 = vmatprep.subr.mxu0 0.0
    %602 = vmatpush1.msra.mxu0 %v578
    %603 = vmatprep.subr.mxu0 0.0
    %604 = vmatpush1.msra.mxu0 %v577
    %605 = vmatprep.subr.mxu0 0.0
    %606 = vmatpush1.msra.mxu0 %v576
    %607 = vmatprep.subr.mxu0 0.0
    %608 = vmatpush1.msra.mxu0 %v575
    %609 = vmatprep.subr.mxu0 0.0
    %610 = vmatpush1.msra.mxu0 %v574
    %611 = vmatprep.subr.mxu0 0.0
    %612 = vmatpush1.msra.mxu0 %v573
    %613 = vmatprep.subr.mxu0 0.0
    %614 = vmatpush1.msra.mxu0 %v572
    %615 = vmatprep.subr.mxu0 0.0
    %616 = vmatpush1.msra.mxu0 %v571
    %617 = vmatprep.subr.mxu0 0.0
    %618 = vmatpush1.msra.mxu0 %v570
    %619 = vmatprep.subr.mxu0 0.0
    %620 = vmatpush1.msra.mxu0 %v569
    %621 = vmatprep.subr.mxu0 0.0
    %622 = vmatpush1.msra.mxu0 %v568
    %623 = vmatprep.subr.mxu0 0.0
    %624 = vmatpush2.msra.mxu0 0.0
    %625 = vmatprep.subr.mxu0 0.0
    %626 = vmatpush2.msra.mxu0 0.0
    %627 = vmatprep.subr.mxu0 0.0
    %628 = vmatpush2.msra.mxu0 0.0
    %629 = vmatprep.subr.mxu0 0.0
    %630 = vmatpush2.msra.mxu0 0.0
    %631 = vmatprep.subr.mxu0 0.0
    %632 = vmatpush2.msra.mxu0 0.0
    %633 = vmatprep.subr.mxu0 0.0
    %634 = vmatpush2.msra.mxu0 0.0
    %635 = vmatprep.subr.mxu0 0.0
    %636 = vmatpush2.msra.mxu0 0.0
    %637 = vmatprep.subr.mxu0 0.0
    %638 = vmatpush2.msra.mxu0 0.0
    %639 = vmatprep.subr.mxu0 0.0
    %640 = vmatpush2.msra.mxu0 0.0
    %641 = vmatprep.subr.mxu0 0.0
    %642 = vmatpush2.msra.mxu0 0.0
    %643 = vmatprep.subr.mxu0 0.0
    %644 = vmatpush2.msra.mxu0 0.0
    %645 = vmatprep.subr.mxu0 0.0
    %646 = vmatpush2.msra.mxu0 0.0
    %647 = vmatprep.subr.mxu0 0.0
    %648 = vmatpush2.msra.mxu0 0.0
    %649 = vmatprep.subr.mxu0 0.0
    %650 = vmatpush2.msra.mxu0 0.0
    %651 = vmatprep.subr.mxu0 0.0
    %652 = vmatpush2.msra.mxu0 0.0
    %653 = vmatprep.subr.mxu0 0.0
    %654 = vmatpush2.msra.mxu0 0.0
    %655 = vmatprep.mubr.f32.mxu0 0.0
    %656 = vmatmul.mubr.f32.gmra.mxu0 %v567
    %v657 = vpop.f32.mrf.mxu0
    %v658 = vadd.f32 %v589, %v657
    %v659 = vpop.f32.mrf.mxu0
    %660 = vdwg.mxu0
    %v661 = vxor.u32 %v658, 2147483648
    %v662 = vmul.f32 %v661, 1.442695
    %v663 = vpow.pop %v662
    %v664 = vadd.f32 %v663, 1.0
    %v665 = vrcp.pop %v664
    %v666 = vmul.f32 1.0, %v665
    %v667 = vmul.f32 %v658, %v666
    %v668 = vld [vmem:[#allocation13] sm:$0xff]
    %v669 = vld [vmem:[#allocation13 + $0x8] sm:$0xff]
    %v670 = vld [vmem:[#allocation13 + $0x10] sm:$0xff]
    %v671 = vld [vmem:[#allocation13 + $0x18] sm:$0xff]
    %v672 = vld [vmem:[#allocation13 + $0x20] sm:$0xff]
    %v673 = vld [vmem:[#allocation13 + $0x28] sm:$0xff]
    %v674 = vld [vmem:[#allocation13 + $0x30] sm:$0xff]
    %v675 = vld [vmem:[#allocation13 + $0x38] sm:$0xff]
    %v676 = vld [vmem:[#allocation13 + $0x40] sm:$0xff]
    %v677 = vld [vmem:[#allocation13 + $0x48] sm:$0xff]
    %v678 = vld [vmem:[#allocation13 + $0x50] sm:$0xff]
    %v679 = vld [vmem:[#allocation13 + $0x58] sm:$0xff]
    %v680 = vld [vmem:[#allocation13 + $0x60] sm:$0xff]
    %v681 = vld [vmem:[#allocation13 + $0x68] sm:$0xff]
    %v682 = vld [vmem:[#allocation13 + $0x70] sm:$0xff]
    %v683 = vld [vmem:[#allocation13 + $0x78] sm:$0xff]
    %v684 = vld [vmem:[%s11] sm:$0x1]
    %v686 = vlaneseq
    %v687 = vshrl.u32 %v686, 7
    %v688 = vsub.s32 0, %v687
    %v689 = vrot.slane %v684, %v688
    %691 = vmatprep.subr.mxu0 0.0
    %692 = vmatpush1.msra.mxu0 %v683
    %693 = vmatprep.subr.mxu0 0.0
    %694 = vmatpush1.msra.mxu0 %v682
    %695 = vmatprep.subr.mxu0 0.0
    %696 = vmatpush1.msra.mxu0 %v681
    %697 = vmatprep.subr.mxu0 0.0
    %698 = vmatpush1.msra.mxu0 %v680
    %699 = vmatprep.subr.mxu0 0.0
    %700 = vmatpush1.msra.mxu0 %v679
    %701 = vmatprep.subr.mxu0 0.0
    %702 = vmatpush1.msra.mxu0 %v678
    %703 = vmatprep.subr.mxu0 0.0
    %704 = vmatpush1.msra.mxu0 %v677
    %705 = vmatprep.subr.mxu0 0.0
    %706 = vmatpush1.msra.mxu0 %v676
    %707 = vmatprep.subr.mxu0 0.0
    %708 = vmatpush1.msra.mxu0 %v675
    %709 = vmatprep.subr.mxu0 0.0
    %710 = vmatpush1.msra.mxu0 %v674
    %711 = vmatprep.subr.mxu0 0.0
    %712 = vmatpush1.msra.mxu0 %v673
    %713 = vmatprep.subr.mxu0 0.0
    %714 = vmatpush1.msra.mxu0 %v672
    %715 = vmatprep.subr.mxu0 0.0
    %716 = vmatpush1.msra.mxu0 %v671
    %717 = vmatprep.subr.mxu0 0.0
    %718 = vmatpush1.msra.mxu0 %v670
    %719 = vmatprep.subr.mxu0 0.0
    %720 = vmatpush1.msra.mxu0 %v669
    %721 = vmatprep.subr.mxu0 0.0
    %722 = vmatpush1.msra.mxu0 %v668
    %723 = vmatprep.subr.mxu0 0.0
    %724 = vmatpush2.msra.mxu0 0.0
    %725 = vmatprep.subr.mxu0 0.0
    %726 = vmatpush2.msra.mxu0 0.0
    %727 = vmatprep.subr.mxu0 0.0
    %728 = vmatpush2.msra.mxu0 0.0
    %729 = vmatprep.subr.mxu0 0.0
    %730 = vmatpush2.msra.mxu0 0.0
    %731 = vmatprep.subr.mxu0 0.0
    %732 = vmatpush2.msra.mxu0 0.0
    %733 = vmatprep.subr.mxu0 0.0
    %734 = vmatpush2.msra.mxu0 0.0
    %735 = vmatprep.subr.mxu0 0.0
    %736 = vmatpush2.msra.mxu0 0.0
    %737 = vmatprep.subr.mxu0 0.0
    %738 = vmatpush2.msra.mxu0 0.0
    %739 = vmatprep.subr.mxu0 0.0
    %740 = vmatpush2.msra.mxu0 0.0
    %741 = vmatprep.subr.mxu0 0.0
    %742 = vmatpush2.msra.mxu0 0.0
    %743 = vmatprep.subr.mxu0 0.0
    %744 = vmatpush2.msra.mxu0 0.0
    %745 = vmatprep.subr.mxu0 0.0
    %746 = vmatpush2.msra.mxu0 0.0
    %747 = vmatprep.subr.mxu0 0.0
    %748 = vmatpush2.msra.mxu0 0.0
    %749 = vmatprep.subr.mxu0 0.0
    %750 = vmatpush2.msra.mxu0 0.0
    %751 = vmatprep.subr.mxu0 0.0
    %752 = vmatpush2.msra.mxu0 0.0
    %753 = vmatprep.subr.mxu0 0.0
    %754 = vmatpush2.msra.mxu0 0.0
    %755 = vmatprep.mubr.f32.mxu0 0.0
    %756 = vmatmul.mubr.f32.gmra.mxu0 %v667
    %v757 = vpop.f32.mrf.mxu0
    %v758 = vadd.f32 %v689, %v757
    %v759 = vpop.f32.mrf.mxu0
    %760 = vdwg.mxu0
    %761 = vst [vmem:[#allocation14] sm:$0xff] %v758
    // Predicated region
    $region78: #{tpu_custom_call.1} parent=1 // pred_check
      _
    $region79: #{tpu_custom_call.1} parent=1 // pred_check_branch
      %763 = sbr.rel (0) target = $region81
    $region80: #{tpu_custom_call.1} parent=1 // pred_region
      %s765 = ssub.s32 128, 128
      %766 = vsyncadd [#allocation4], %s765
      %s768 = sshll.u32 [#allocation14], 4
      %s769 = int_to_ptr.vmem [resolvable:$true] %s768
      %771 = dma.vmem_to_hbm [thread:$0]  %s769, 128, %s12, [#allocation4]
    $region81: #{tpu_custom_call.1} parent=1 // pred_fallthru
      _
    // Predicated region
    $region82: #{tpu_custom_call.1} parent=1 // pred_check
      _
    $region83: #{tpu_custom_call.1} parent=1 // pred_check_branch
      %773 = sbr.rel (0) target = $region85
    $region84: #{tpu_custom_call.1} parent=1 // pred_region
      %774 = dma.done [#allocation4], 128
    $region85: #{tpu_custom_call.1} parent=1 // pred_fallthru
      _
    %775 = vsyncpa [#allocation3], 1
    %776 = vsyncpa [#allocation6], 1
    %777 = vsyncpa [#allocation9], 1
    %778 = vsyncpa [#allocation12], 1
    %779 = vsyncpa [#allocation4], 1

</llo_original>
